<compile_context>
chip_gen: v6e
topology: v6e:2x2x1
jax: 0.10.0
libtpu: 0.0.40
codegen_flags: <defaults>
</compile_context>

<pallas_src>
import functools

import numpy as np

import jax
import jax.numpy as jnp
from jax.experimental import pallas as pl
from jax.experimental.pallas import tpu as pltpu


LANES = 128     # lane-dense padding for every slab's last axis
VROWS = 8       # sublane-aligned row count for the small vector slabs


def _round_up(n, m):
    return ((n + m - 1) // m) * m


# ----------------------------------------------------------------------------
# Fused kernel: whole leaf->root chain, 3 packed operands, 1 padded output.
#   dims: tuple of (input_dim, hidden_dim, output_dim) per module, leaf first.
# ----------------------------------------------------------------------------
def _make_fused_chain_kernel(dims):
    num_modules = len(dims)
    root_out = dims[-1][2]

    def kernel(w_ref, v_ref, x_ref, out_ref):
        # ---- Prologue: child-independent first-layer pre-activations -------
        # (keeps the x @ W1_x dots off the serial child dependency chain)
        pre = []
        for m in range(num_modules):
            din, dh, _ = dims[m]
            xm = x_ref[m, 0:1, 0:din]                      # [1, in]
            w1x = w_ref[m, 0:din, 0:dh]                    # [in, H]
            b1 = v_ref[m, 1:2, 0:dh]                       # [1, H]
            pre.append(jnp.dot(xm, w1x,
                               preferred_element_type=jnp.float32) + b1)

        # ---- Serial child chain (leaf -> root) ------------------------------
        child = jnp.zeros((1, 1), jnp.float32)             # torch.zeros(1, 1)
        for m in range(num_modules):
            din, dh, dout = dims[m]
            r2 = _round_up(din, 8)                          # w2 row offset
            r3 = r2 + _round_up(dh, 8)                      # w3 row offset
            w1c = v_ref[m, 0:1, 0:dh]                       # [1, H]
            b2 = v_ref[m, 2:3, 0:dh]                        # [1, H]
            b3 = v_ref[m, 3:4, 0:dout]                      # [1, out]
            w2 = w_ref[m, r2:r2 + dh, 0:dh]                 # [H, H]
            w3 = w_ref[m, r3:r3 + dh, 0:dout]               # [H, out]

            # cat([x, child], 1) @ W1 + b1 == (x @ W1_x + b1) + child * W1_c
            h = jnp.maximum(pre[m] + child * w1c, 0.0)
            h = jnp.maximum(
                jnp.dot(h, w2, preferred_element_type=jnp.float32) + b2, 0.0)
            child = jnp.dot(h, w3,
                            preferred_element_type=jnp.float32) + b3

        # ---- Lane-dense output store ----------------------------------------
        out_ref[...] = jnp.zeros_like(out_ref)              # full (8,128) store
        out_ref[0:1, 0:root_out] = child.astype(out_ref.dtype)

    return kernel


@functools.lru_cache(maxsize=None)
def _build_fused_call(dims, rw, lanes):
    num_modules = len(dims)
    root_out = dims[-1][2]
    kernel = _make_fused_chain_kernel(dims)

    flops = int(sum(2 * (i * h + h * h + h * o) for (i, h, o) in dims))
    bytes_accessed = 4 * (num_modules * rw * lanes          # W slab
                          + 2 * num_modules * VROWS * lanes  # V + X slabs
                          + VROWS * lanes)                   # output block

    vmem_spec = pl.BlockSpec(memory_space=pltpu.MemorySpace.VMEM)

    @jax.jit
    def run(w_slab, v_slab, *xs):
        # Pack per-module inputs into one lane-dense [M, 8, LANES] slab (XLA-side).
        rows = []
        for m, (din, _, _) in enumerate(dims):
            xi = xs[m].reshape(1, din).astype(jnp.float32)
            rows.append(jnp.zeros((VROWS, lanes), jnp.float32)
                        .at[0:1, 0:din].set(xi))
        x_slab = jnp.stack(rows, axis=0)

        out = pl.pallas_call(
            kernel,
            out_shape=jax.ShapeDtypeStruct((VROWS, lanes), jnp.float32),
            in_specs=[vmem_spec] * 3,
            out_specs=vmem_spec,
            cost_estimate=pl.CostEstimate(flops=flops, transcendentals=0,
                                          bytes_accessed=bytes_accessed),
        )(w_slab, v_slab, x_slab)
        return out[0:1, 0:root_out]

    return run


# ----------------------------------------------------------------------------
# Parameter construction (deterministic, PyTorch-Linear-style uniform init)
# ----------------------------------------------------------------------------
def _init_linear(key, in_dim, out_dim):
    kw, kb = jax.random.split(key)
    bound = 1.0 / jnp.sqrt(jnp.float32(in_dim))
    w = jax.random.uniform(kw, (in_dim, out_dim), jnp.float32, -bound, bound)
    b = jax.random.uniform(kb, (1, out_dim), jnp.float32, -bound, bound)
    return w, b


def init_module_net(key, input_dim, hidden_dim, output_dim):
    k1, k2, k3 = jax.random.split(key, 3)
    w1, b1 = _init_linear(k1, input_dim + 1, hidden_dim)  # +1 for child_output
    w2, b2 = _init_linear(k2, hidden_dim, hidden_dim)
    w3, b3 = _init_linear(k3, hidden_dim, output_dim)
    # Store W1 pre-split: rows [0:input_dim] act on x, row [input_dim] on child.
    return dict(w1_x=w1[:input_dim], w1_c=w1[input_dim:input_dim + 1], b1=b1,
                w2=w2, b2=b2, w3=w3, b3=b3)


def init_modular_model(key, module_configs):
    params = {}
    for idx, (module_id, cfg) in enumerate(sorted(module_configs.items())):
        params[module_id] = init_module_net(
            jax.random.fold_in(key, idx),
            cfg["input_dim"], cfg["hidden_dim"], cfg["output_dim"])
    return params


# ----------------------------------------------------------------------------
# Chain linearization + one-time slab packing
# ----------------------------------------------------------------------------
def _linearize_chain(json_structure):
    """Root->leaf walk following children[0]; returns leaf-first id list."""
    chain = []
    node = json_structure
    while node is not None:
        chain.append(str(node["module_id"]))
        children = node.get("children")
        node = children[0] if children else None
    return chain[::-1]   # leaf first


def pack_modular_model(params, json_structure):
    """Pre-pad all chain parameters into lane-dense slabs (do this once)."""
    chain = _linearize_chain(json_structure)
    dims = tuple((int(params[mid]["w1_x"].shape[0]),
                  int(params[mid]["w2"].shape[0]),
                  int(params[mid]["w3"].shape[1])) for mid in chain)
    max_dim = max(max(d) for d in dims)
    lanes = max(LANES, _round_up(max_dim, LANES))
    rw = max(_round_up(i, 8) + 2 * _round_up(h, 8) for (i, h, _) in dims)

    num_modules = len(chain)
    w_slab = np.zeros((num_modules, rw, lanes), np.float32)
    v_slab = np.zeros((num_modules, VROWS, lanes), np.float32)
    for m, mid in enumerate(chain):
        din, dh, dout = dims[m]
        p = params[mid]
        r2 = _round_up(din, 8)
        r3 = r2 + _round_up(dh, 8)
        w_slab[m, 0:din, 0:dh] = np.asarray(p["w1_x"], np.float32)
        w_slab[m, r2:r2 + dh, 0:dh] = np.asarray(p["w2"], np.float32)
        w_slab[m, r3:r3 + dh, 0:dout] = np.asarray(p["w3"], np.float32)
        v_slab[m, 0, 0:dh] = np.asarray(p["w1_c"], np.float32).reshape(-1)
        v_slab[m, 1, 0:dh] = np.asarray(p["b1"], np.float32).reshape(-1)
        v_slab[m, 2, 0:dh] = np.asarray(p["b2"], np.float32).reshape(-1)
        v_slab[m, 3, 0:dout] = np.asarray(p["b3"], np.float32).reshape(-1)

    return dict(chain=chain, dims=dims, rw=rw, lanes=lanes,
                w_slab=jnp.asarray(w_slab), v_slab=jnp.asarray(v_slab))


def modular_model_forward_packed(packed, x):
    run = _build_fused_call(packed["dims"], packed["rw"], packed["lanes"])
    xs = [x[mid] for mid in packed["chain"]]
    return run(packed["w_slab"], packed["v_slab"], *xs)


def modular_model_forward(params, x, json_structure):
    """Convenience wrapper: pack + run (use the packed API in a real loop)."""
    return modular_model_forward_packed(
        pack_modular_model(params, json_structure), x)


# ----------------------------------------------------------------------------
# Pure-JAX reference (no Pallas) for correctness check.
# ----------------------------------------------------------------------------
def _reference_forward(params, x, json_structure):
    def mlp(p, xi, child):
        w1 = jnp.concatenate([p["w1_x"], p["w1_c"]], axis=0)
        xc = jnp.concatenate([xi, child.astype(xi.dtype)], axis=1)
        h = jnp.maximum(xc @ w1 + p["b1"], 0.0)
        h = jnp.maximum(h @ p["w2"] + p["b2"], 0.0)
        return h @ p["w3"] + p["b3"]

    def rec(node):
        module_id = str(node["module_id"])
        xi = x[module_id]
        if xi.ndim == 1:
            xi = xi[None, :]
        child = jnp.zeros((1, 1), jnp.float32)
        if node.get("children"):
            child = rec(node["children"][0])
        return mlp(params[module_id], xi, child)

    return rec(json_structure)


if __name__ == "__main__":
    # 3-deep chain. Non-root modules have output_dim == 1 (their scalar output
    # feeds the parent's extra input column); batch is 1, matching the PyTorch
    # leaf child_output = torch.zeros(1, 1).
    module_configs = {
        "0": {"input_dim": 8, "hidden_dim": 32, "output_dim": 4},  # root
        "1": {"input_dim": 8, "hidden_dim": 32, "output_dim": 1},
        "2": {"input_dim": 8, "hidden_dim": 32, "output_dim": 1},  # leaf
    }
    json_structure = {
        "module_id": 0,
        "children": [{
            "module_id": 1,
            "children": [{"module_id": 2, "children": None}],
        }],
    }

    key = jax.random.PRNGKey(0)
    kparams, kx = jax.random.split(key)
    params = init_modular_model(kparams, module_configs)

    # Per-module inputs x[module_id]: shape [1, input_dim]
    x = {}
    for i, (module_id, cfg) in enumerate(sorted(module_configs.items())):
        x[module_id] = jax.random.normal(
            jax.random.fold_in(kx, i), (1, cfg["input_dim"]), jnp.float32)

    packed = pack_modular_model(params, json_structure)        # once
    out = modular_model_forward_packed(packed, x)               # per call
    out = jax.block_until_ready(out)

    ref = _reference_forward(params, x, json_structure)
    assert out.shape == (1, module_configs["0"]["output_dim"]), out.shape
    assert jnp.allclose(out, ref, atol=1e-5, rtol=1e-5), (out, ref)

    print("KERNEL_OK")
</pallas_src>

<mosaic_0001>
module attributes {stable_mosaic.version = 11 : i64} {
  func.func @kernel(%arg0: memref<3x72x128xf32, #tpu.memory_space<vmem>>, %arg1: memref<3x8x128xf32, #tpu.memory_space<vmem>>, %arg2: memref<3x8x128xf32, #tpu.memory_space<vmem>>, %arg3: memref<8x128xf32, #tpu.memory_space<vmem>>) attributes {dimension_semantics = [], scalar_prefetch = 0 : i64, scratch_operands = 0 : i64, tpu.core_type = #tpu.core_type<tc>} {
    %c0 = arith.constant 0 : index
    %c0_0 = arith.constant 0 : index
    %c0_1 = arith.constant 0 : index
    %0 = vector.load %arg2[%c0, %c0_0, %c0_1] : memref<3x8x128xf32, #tpu.memory_space<vmem>>, vector<1x1x8xf32>
    %1 = vector.shape_cast %0 : vector<1x1x8xf32> to vector<1x8xf32>
    %c0_2 = arith.constant 0 : index
    %c0_3 = arith.constant 0 : index
    %c0_4 = arith.constant 0 : index
    %2 = vector.load %arg0[%c0_2, %c0_3, %c0_4] : memref<3x72x128xf32, #tpu.memory_space<vmem>>, vector<1x8x32xf32>
    %3 = vector.shape_cast %2 : vector<1x8x32xf32> to vector<8x32xf32>
    %c0_5 = arith.constant 0 : index
    %c1 = arith.constant 1 : index
    %c0_6 = arith.constant 0 : index
    %4 = vector.load %arg1[%c0_5, %c1, %c0_6] : memref<3x8x128xf32, #tpu.memory_space<vmem>>, vector<1x1x32xf32>
    %5 = vector.shape_cast %4 : vector<1x1x32xf32> to vector<1x32xf32>
    %cst = arith.constant dense<0.000000e+00> : vector<1x32xf32>
    %6 = tpu.matmul %1, %3, %cst {dimension_numbers = #tpu.dot_dimension_numbers<[1], [0], [0], [1], [0, 0, 1, 1], [], []>} : vector<1x8xf32>, vector<8x32xf32>, vector<1x32xf32> -> vector<1x32xf32>
    %7 = arith.addf %6, %5 : vector<1x32xf32>
    %c1_7 = arith.constant 1 : index
    %c0_8 = arith.constant 0 : index
    %c0_9 = arith.constant 0 : index
    %8 = vector.load %arg2[%c1_7, %c0_8, %c0_9] : memref<3x8x128xf32, #tpu.memory_space<vmem>>, vector<1x1x8xf32>
    %9 = vector.shape_cast %8 : vector<1x1x8xf32> to vector<1x8xf32>
    %c1_10 = arith.constant 1 : index
    %c0_11 = arith.constant 0 : index
    %c0_12 = arith.constant 0 : index
    %10 = vector.load %arg0[%c1_10, %c0_11, %c0_12] : memref<3x72x128xf32, #tpu.memory_space<vmem>>, vector<1x8x32xf32>
    %11 = vector.shape_cast %10 : vector<1x8x32xf32> to vector<8x32xf32>
    %c1_13 = arith.constant 1 : index
    %c1_14 = arith.constant 1 : index
    %c0_15 = arith.constant 0 : index
    %12 = vector.load %arg1[%c1_13, %c1_14, %c0_15] : memref<3x8x128xf32, #tpu.memory_space<vmem>>, vector<1x1x32xf32>
    %13 = vector.shape_cast %12 : vector<1x1x32xf32> to vector<1x32xf32>
    %cst_16 = arith.constant dense<0.000000e+00> : vector<1x32xf32>
    %14 = tpu.matmul %9, %11, %cst_16 {dimension_numbers = #tpu.dot_dimension_numbers<[1], [0], [0], [1], [0, 0, 1, 1], [], []>} : vector<1x8xf32>, vector<8x32xf32>, vector<1x32xf32> -> vector<1x32xf32>
    %15 = arith.addf %14, %13 : vector<1x32xf32>
    %c2 = arith.constant 2 : index
    %c0_17 = arith.constant 0 : index
    %c0_18 = arith.constant 0 : index
    %16 = vector.load %arg2[%c2, %c0_17, %c0_18] : memref<3x8x128xf32, #tpu.memory_space<vmem>>, vector<1x1x8xf32>
    %17 = vector.shape_cast %16 : vector<1x1x8xf32> to vector<1x8xf32>
    %c2_19 = arith.constant 2 : index
    %c0_20 = arith.constant 0 : index
    %c0_21 = arith.constant 0 : index
    %18 = vector.load %arg0[%c2_19, %c0_20, %c0_21] : memref<3x72x128xf32, #tpu.memory_space<vmem>>, vector<1x8x32xf32>
    %19 = vector.shape_cast %18 : vector<1x8x32xf32> to vector<8x32xf32>
    %c2_22 = arith.constant 2 : index
    %c1_23 = arith.constant 1 : index
    %c0_24 = arith.constant 0 : index
    %20 = vector.load %arg1[%c2_22, %c1_23, %c0_24] : memref<3x8x128xf32, #tpu.memory_space<vmem>>, vector<1x1x32xf32>
    %21 = vector.shape_cast %20 : vector<1x1x32xf32> to vector<1x32xf32>
    %cst_25 = arith.constant dense<0.000000e+00> : vector<1x32xf32>
    %22 = tpu.matmul %17, %19, %cst_25 {dimension_numbers = #tpu.dot_dimension_numbers<[1], [0], [0], [1], [0, 0, 1, 1], [], []>} : vector<1x8xf32>, vector<8x32xf32>, vector<1x32xf32> -> vector<1x32xf32>
    %23 = arith.addf %22, %21 : vector<1x32xf32>
    %cst_26 = arith.constant 0.000000e+00 : f32
    %24 = vector.broadcast %cst_26 : f32 to vector<1x1xf32>
    %c0_27 = arith.constant 0 : index
    %c0_28 = arith.constant 0 : index
    %c0_29 = arith.constant 0 : index
    %25 = vector.load %arg1[%c0_27, %c0_28, %c0_29] : memref<3x8x128xf32, #tpu.memory_space<vmem>>, vector<1x1x32xf32>
    %26 = vector.shape_cast %25 : vector<1x1x32xf32> to vector<1x32xf32>
    %c0_30 = arith.constant 0 : index
    %c2_31 = arith.constant 2 : index
    %c0_32 = arith.constant 0 : index
    %27 = vector.load %arg1[%c0_30, %c2_31, %c0_32] : memref<3x8x128xf32, #tpu.memory_space<vmem>>, vector<1x1x32xf32>
    %28 = vector.shape_cast %27 : vector<1x1x32xf32> to vector<1x32xf32>
    %c0_33 = arith.constant 0 : index
    %c3 = arith.constant 3 : index
    %c0_34 = arith.constant 0 : index
    %29 = vector.load %arg1[%c0_33, %c3, %c0_34] : memref<3x8x128xf32, #tpu.memory_space<vmem>>, vector<1x1x1xf32>
    %30 = vector.shape_cast %29 : vector<1x1x1xf32> to vector<1x1xf32>
    %c0_35 = arith.constant 0 : index
    %c8 = arith.constant 8 : index
    %c0_36 = arith.constant 0 : index
    %31 = vector.load %arg0[%c0_35, %c8, %c0_36] : memref<3x72x128xf32, #tpu.memory_space<vmem>>, vector<1x32x32xf32>
    %32 = vector.shape_cast %31 : vector<1x32x32xf32> to vector<32x32xf32>
    %c0_37 = arith.constant 0 : index
    %c40 = arith.constant 40 : index
    %c0_38 = arith.constant 0 : index
    %33 = vector.load %arg0[%c0_37, %c40, %c0_38] : memref<3x72x128xf32, #tpu.memory_space<vmem>>, vector<1x32x1xf32>
    %34 = vector.shape_cast %33 : vector<1x32x1xf32> to vector<32x1xf32>
    %35 = vector.broadcast %24 : vector<1x1xf32> to vector<1x32xf32>
    %36 = arith.mulf %35, %26 : vector<1x32xf32>
    %37 = arith.addf %7, %36 : vector<1x32xf32>
    %cst_39 = arith.constant 0.000000e+00 : f32
    %38 = vector.broadcast %cst_39 : f32 to vector<1x32xf32>
    %39 = arith.maximumf %37, %38 : vector<1x32xf32>
    %cst_40 = arith.constant dense<0.000000e+00> : vector<1x32xf32>
    %40 = tpu.matmul %39, %32, %cst_40 {dimension_numbers = #tpu.dot_dimension_numbers<[1], [0], [0], [1], [0, 0, 1, 1], [], []>} : vector<1x32xf32>, vector<32x32xf32>, vector<1x32xf32> -> vector<1x32xf32>
    %41 = arith.addf %40, %28 : vector<1x32xf32>
    %cst_41 = arith.constant 0.000000e+00 : f32
    %42 = vector.broadcast %cst_41 : f32 to vector<1x32xf32>
    %43 = arith.maximumf %41, %42 : vector<1x32xf32>
    %cst_42 = arith.constant dense<0.000000e+00> : vector<1x1xf32>
    %44 = tpu.matmul %43, %34, %cst_42 {dimension_numbers = #tpu.dot_dimension_numbers<[1], [0], [0], [1], [0, 0, 1, 1], [], []>} : vector<1x32xf32>, vector<32x1xf32>, vector<1x1xf32> -> vector<1x1xf32>
    %45 = arith.addf %44, %30 : vector<1x1xf32>
    %c1_43 = arith.constant 1 : index
    %c0_44 = arith.constant 0 : index
    %c0_45 = arith.constant 0 : index
    %46 = vector.load %arg1[%c1_43, %c0_44, %c0_45] : memref<3x8x128xf32, #tpu.memory_space<vmem>>, vector<1x1x32xf32>
    %47 = vector.shape_cast %46 : vector<1x1x32xf32> to vector<1x32xf32>
    %c1_46 = arith.constant 1 : index
    %c2_47 = arith.constant 2 : index
    %c0_48 = arith.constant 0 : index
    %48 = vector.load %arg1[%c1_46, %c2_47, %c0_48] : memref<3x8x128xf32, #tpu.memory_space<vmem>>, vector<1x1x32xf32>
    %49 = vector.shape_cast %48 : vector<1x1x32xf32> to vector<1x32xf32>
    %c1_49 = arith.constant 1 : index
    %c3_50 = arith.constant 3 : index
    %c0_51 = arith.constant 0 : index
    %50 = vector.load %arg1[%c1_49, %c3_50, %c0_51] : memref<3x8x128xf32, #tpu.memory_space<vmem>>, vector<1x1x1xf32>
    %51 = vector.shape_cast %50 : vector<1x1x1xf32> to vector<1x1xf32>
    %c1_52 = arith.constant 1 : index
    %c8_53 = arith.constant 8 : index
    %c0_54 = arith.constant 0 : index
    %52 = vector.load %arg0[%c1_52, %c8_53, %c0_54] : memref<3x72x128xf32, #tpu.memory_space<vmem>>, vector<1x32x32xf32>
    %53 = vector.shape_cast %52 : vector<1x32x32xf32> to vector<32x32xf32>
    %c1_55 = arith.constant 1 : index
    %c40_56 = arith.constant 40 : index
    %c0_57 = arith.constant 0 : index
    %54 = vector.load %arg0[%c1_55, %c40_56, %c0_57] : memref<3x72x128xf32, #tpu.memory_space<vmem>>, vector<1x32x1xf32>
    %55 = vector.shape_cast %54 : vector<1x32x1xf32> to vector<32x1xf32>
    %56 = vector.broadcast %45 : vector<1x1xf32> to vector<1x32xf32>
    %57 = arith.mulf %56, %47 : vector<1x32xf32>
    %58 = arith.addf %15, %57 : vector<1x32xf32>
    %cst_58 = arith.constant 0.000000e+00 : f32
    %59 = vector.broadcast %cst_58 : f32 to vector<1x32xf32>
    %60 = arith.maximumf %58, %59 : vector<1x32xf32>
    %cst_59 = arith.constant dense<0.000000e+00> : vector<1x32xf32>
    %61 = tpu.matmul %60, %53, %cst_59 {dimension_numbers = #tpu.dot_dimension_numbers<[1], [0], [0], [1], [0, 0, 1, 1], [], []>} : vector<1x32xf32>, vector<32x32xf32>, vector<1x32xf32> -> vector<1x32xf32>
    %62 = arith.addf %61, %49 : vector<1x32xf32>
    %cst_60 = arith.constant 0.000000e+00 : f32
    %63 = vector.broadcast %cst_60 : f32 to vector<1x32xf32>
    %64 = arith.maximumf %62, %63 : vector<1x32xf32>
    %cst_61 = arith.constant dense<0.000000e+00> : vector<1x1xf32>
    %65 = tpu.matmul %64, %55, %cst_61 {dimension_numbers = #tpu.dot_dimension_numbers<[1], [0], [0], [1], [0, 0, 1, 1], [], []>} : vector<1x32xf32>, vector<32x1xf32>, vector<1x1xf32> -> vector<1x1xf32>
    %66 = arith.addf %65, %51 : vector<1x1xf32>
    %c2_62 = arith.constant 2 : index
    %c0_63 = arith.constant 0 : index
    %c0_64 = arith.constant 0 : index
    %67 = vector.load %arg1[%c2_62, %c0_63, %c0_64] : memref<3x8x128xf32, #tpu.memory_space<vmem>>, vector<1x1x32xf32>
    %68 = vector.shape_cast %67 : vector<1x1x32xf32> to vector<1x32xf32>
    %c2_65 = arith.constant 2 : index
    %c2_66 = arith.constant 2 : index
    %c0_67 = arith.constant 0 : index
    %69 = vector.load %arg1[%c2_65, %c2_66, %c0_67] : memref<3x8x128xf32, #tpu.memory_space<vmem>>, vector<1x1x32xf32>
    %70 = vector.shape_cast %69 : vector<1x1x32xf32> to vector<1x32xf32>
    %c2_68 = arith.constant 2 : index
    %c3_69 = arith.constant 3 : index
    %c0_70 = arith.constant 0 : index
    %71 = vector.load %arg1[%c2_68, %c3_69, %c0_70] : memref<3x8x128xf32, #tpu.memory_space<vmem>>, vector<1x1x4xf32>
    %72 = vector.shape_cast %71 : vector<1x1x4xf32> to vector<1x4xf32>
    %c2_71 = arith.constant 2 : index
    %c8_72 = arith.constant 8 : index
    %c0_73 = arith.constant 0 : index
    %73 = vector.load %arg0[%c2_71, %c8_72, %c0_73] : memref<3x72x128xf32, #tpu.memory_space<vmem>>, vector<1x32x32xf32>
    %74 = vector.shape_cast %73 : vector<1x32x32xf32> to vector<32x32xf32>
    %c2_74 = arith.constant 2 : index
    %c40_75 = arith.constant 40 : index
    %c0_76 = arith.constant 0 : index
    %75 = vector.load %arg0[%c2_74, %c40_75, %c0_76] : memref<3x72x128xf32, #tpu.memory_space<vmem>>, vector<1x32x4xf32>
    %76 = vector.shape_cast %75 : vector<1x32x4xf32> to vector<32x4xf32>
    %77 = vector.broadcast %66 : vector<1x1xf32> to vector<1x32xf32>
    %78 = arith.mulf %77, %68 : vector<1x32xf32>
    %79 = arith.addf %23, %78 : vector<1x32xf32>
    %cst_77 = arith.constant 0.000000e+00 : f32
    %80 = vector.broadcast %cst_77 : f32 to vector<1x32xf32>
    %81 = arith.maximumf %79, %80 : vector<1x32xf32>
    %cst_78 = arith.constant dense<0.000000e+00> : vector<1x32xf32>
    %82 = tpu.matmul %81, %74, %cst_78 {dimension_numbers = #tpu.dot_dimension_numbers<[1], [0], [0], [1], [0, 0, 1, 1], [], []>} : vector<1x32xf32>, vector<32x32xf32>, vector<1x32xf32> -> vector<1x32xf32>
    %83 = arith.addf %82, %70 : vector<1x32xf32>
    %cst_79 = arith.constant 0.000000e+00 : f32
    %84 = vector.broadcast %cst_79 : f32 to vector<1x32xf32>
    %85 = arith.maximumf %83, %84 : vector<1x32xf32>
    %cst_80 = arith.constant dense<0.000000e+00> : vector<1x4xf32>
    %86 = tpu.matmul %85, %76, %cst_80 {dimension_numbers = #tpu.dot_dimension_numbers<[1], [0], [0], [1], [0, 0, 1, 1], [], []>} : vector<1x32xf32>, vector<32x4xf32>, vector<1x4xf32> -> vector<1x4xf32>
    %87 = arith.addf %86, %72 : vector<1x4xf32>
    %cst_81 = arith.constant 0.000000e+00 : f32
    %88 = vector.broadcast %cst_81 : f32 to vector<8x128xf32>
    %c0_82 = arith.constant 0 : index
    %c0_83 = arith.constant 0 : index
    %89 = vector.load %arg3[%c0_82, %c0_83] : memref<8x128xf32, #tpu.memory_space<vmem>>, vector<8x128xf32>
    tpu.vector_store %arg3[%c0_82, %c0_83], %88 {strides = array<i32>} : memref<8x128xf32, #tpu.memory_space<vmem>>, vector<8x128xf32>,
    %c0_84 = arith.constant 0 : index
    %c0_85 = arith.constant 0 : index
    %90 = vector.load %arg3[%c0_84, %c0_85] : memref<8x128xf32, #tpu.memory_space<vmem>>, vector<1x4xf32>
    tpu.vector_store %arg3[%c0_84, %c0_85], %87 {strides = array<i32>} : memref<8x128xf32, #tpu.memory_space<vmem>>, vector<1x4xf32>,
    return
  }
}

</mosaic_0001>

<llo_original>
// kernel: run.1
$region0: #{run.1}
  #allocation0 [shape = 'u32[]', space=smem, size = 0x4, offset = 0x4, fixed_abs, tag = 'smem constant byte address 0x4 - core index']
  #allocation1 [shape = 'u32[144,128]{1,0:T(1,128)}', space=vmem, size = 0x12000, scoped, tag = 'internal scratch']
  %s0 = inlined_call_operand.hbm [shape: f32[3,72,128], index: 0, kind: input, shape index: {}]
  %s1 = inlined_call_operand.vmem [shape: f32[3,8,128], index: 1, kind: input, shape index: {}]
  %s2 = inlined_call_operand.vmem [shape: f32[3,8,128], index: 2, kind: input, shape index: {}]
  %s3 = inlined_call_operand.vmem [shape: f32[8,128], index: 3, kind: output, shape index: {}]
  %s4 = sld [smem:[#allocation0]]
  $region26: #{run.1} parent=0
    _
  %s6 = ssub.s32 1, %s4
  %s7 = scalar_select 0, %s6, %s4
  $region1: #{run.1} parent=0
    #allocation2 [shape = 'u8[110592]{0}', space=vmem, size = 0x1b000, scoped, tag = 'input window, operand 0, single buffered']
    #allocation3 [shape = 's32[1]{0}', space=sflag, size = 0x4, scoped, tag = 'scoped memory for run.1']
    %8 = vsyncpa [#allocation3], 0
    // Predicated region
    $region2: #{run.1} parent=1 // pred_check
      _
    $region3: #{run.1} parent=1 // pred_check_branch
      %10 = sbr.rel (0) target = $region5
    $region4: #{run.1} parent=1 // pred_region
      %s12 = ssub.s32 3456, 3456
      %13 = vsyncadd [#allocation3], %s12
      %s14 = sshll.u32 [#allocation2], 4
      %s15 = int_to_ptr.vmem [resolvable:$true] %s14
      %20 = dma.hbm_to_vmem [thread:$0]  %s0, 3456, %s15, [#allocation3], 128, 128, 8
    $region5: #{run.1} parent=1 // pred_fallthru
      _
    // Predicated region
    $region6: #{run.1} parent=1 // pred_check
      _
    $region7: #{run.1} parent=1 // pred_check_branch
      %22 = sbr.rel (0) target = $region9
    $region8: #{run.1} parent=1 // pred_region
      _
    $region9: #{run.1} parent=1 // pred_fallthru
      _
    // Predicated region
    $region10: #{run.1} parent=1 // pred_check
      _
    $region11: #{run.1} parent=1 // pred_check_branch
      %24 = sbr.rel (0) target = $region13
    $region12: #{run.1} parent=1 // pred_region
      _
    $region13: #{run.1} parent=1 // pred_fallthru
      _
    // Predicated region
    $region14: #{run.1} parent=1 // pred_check
      _
    $region15: #{run.1} parent=1 // pred_check_branch
      %26 = sbr.rel (0) target = $region17
    $region16: #{run.1} parent=1 // pred_region
      %27 = dma.done [#allocation3], 3456
    $region17: #{run.1} parent=1 // pred_fallthru
      _
    %v28 = vld [vmem:[%s2] sm:$0x1]
    %v29 = vld [vmem:[#allocation2] sm:$0xff]
    %v30 = vld [vmem:[%s1 + $0x1] sm:$0x1]
    %vm31 = vcmask 64512
    %v33 = vsel %vm31, %v28, 0
    %35 = vmatprep.subr.mxu0 0.0
    %36 = vmatpush1.msra.mxu0 0.0
    %37 = vmatprep.subr.mxu0 0.0
    %38 = vmatpush1.msra.mxu0 0.0
    %39 = vmatprep.subr.mxu0 0.0
    %40 = vmatpush1.msra.mxu0 0.0
    %41 = vmatprep.subr.mxu0 0.0
    %42 = vmatpush1.msra.mxu0 0.0
    %43 = vmatprep.subr.mxu0 0.0
    %44 = vmatpush1.msra.mxu0 0.0
    %45 = vmatprep.subr.mxu0 0.0
    %46 = vmatpush1.msra.mxu0 0.0
    %47 = vmatprep.subr.mxu0 0.0
    %48 = vmatpush1.msra.mxu0 0.0
    %49 = vmatprep.subr.mxu0 0.0
    %50 = vmatpush1.msra.mxu0 0.0
    %51 = vmatprep.subr.mxu0 0.0
    %52 = vmatpush1.msra.mxu0 0.0
    %53 = vmatprep.subr.mxu0 0.0
    %54 = vmatpush1.msra.mxu0 0.0
    %55 = vmatprep.subr.mxu0 0.0
    %56 = vmatpush1.msra.mxu0 0.0
    %57 = vmatprep.subr.mxu0 0.0
    %58 = vmatpush1.msra.mxu0 0.0
    %59 = vmatprep.subr.mxu0 0.0
    %60 = vmatpush1.msra.mxu0 0.0
    %61 = vmatprep.subr.mxu0 0.0
    %62 = vmatpush1.msra.mxu0 0.0
    %63 = vmatprep.subr.mxu0 0.0
    %64 = vmatpush1.msra.mxu0 0.0
    %65 = vmatprep.subr.mxu0 0.0
    %66 = vmatpush1.msra.mxu0 %v29
    %67 = vmatprep.subr.mxu0 0.0
    %68 = vmatpush2.msra.mxu0 0.0
    %69 = vmatprep.subr.mxu0 0.0
    %70 = vmatpush2.msra.mxu0 0.0
    %71 = vmatprep.subr.mxu0 0.0
    %72 = vmatpush2.msra.mxu0 0.0
    %73 = vmatprep.subr.mxu0 0.0
    %74 = vmatpush2.msra.mxu0 0.0
    %75 = vmatprep.subr.mxu0 0.0
    %76 = vmatpush2.msra.mxu0 0.0
    %77 = vmatprep.subr.mxu0 0.0
    %78 = vmatpush2.msra.mxu0 0.0
    %79 = vmatprep.subr.mxu0 0.0
    %80 = vmatpush2.msra.mxu0 0.0
    %81 = vmatprep.subr.mxu0 0.0
    %82 = vmatpush2.msra.mxu0 0.0
    %83 = vmatprep.subr.mxu0 0.0
    %84 = vmatpush2.msra.mxu0 0.0
    %85 = vmatprep.subr.mxu0 0.0
    %86 = vmatpush2.msra.mxu0 0.0
    %87 = vmatprep.subr.mxu0 0.0
    %88 = vmatpush2.msra.mxu0 0.0
    %89 = vmatprep.subr.mxu0 0.0
    %90 = vmatpush2.msra.mxu0 0.0
    %91 = vmatprep.subr.mxu0 0.0
    %92 = vmatpush2.msra.mxu0 0.0
    %93 = vmatprep.subr.mxu0 0.0
    %94 = vmatpush2.msra.mxu0 0.0
    %95 = vmatprep.subr.mxu0 0.0
    %96 = vmatpush2.msra.mxu0 0.0
    %97 = vmatprep.subr.mxu0 0.0
    %98 = vmatpush2.msra.mxu0 0.0
    %99 = vmatprep.mubr.f32.mxu0 0.0
    %100 = vmatmul.mubr.f32.gmra.mxu0 %v33
    %v101 = vpop.f32.mrf.mxu0
    %v102 = vadd.f32 %v30, %v101
    %v103 = vpop.f32.mrf.mxu0
    %104 = vdwg.mxu0
    %s105 = scalar_lea.vmem %s2, 8
    %v106 = vld [vmem:[%s105] sm:$0x1]
    %s107 = scalar_lea.vmem [#allocation2], 72
    %v108 = vld [vmem:[%s107] sm:$0xff]
    %s109 = scalar_lea.vmem %s1, 8
    %v110 = vld [vmem:[%s109 + $0x1] sm:$0x1]
    %v112 = vsel %vm31, %v106, 0
    %114 = vmatprep.subr.mxu0 0.0
    %115 = vmatpush1.msra.mxu0 0.0
    %116 = vmatprep.subr.mxu0 0.0
    %117 = vmatpush1.msra.mxu0 0.0
    %118 = vmatprep.subr.mxu0 0.0
    %119 = vmatpush1.msra.mxu0 0.0
    %120 = vmatprep.subr.mxu0 0.0
    %121 = vmatpush1.msra.mxu0 0.0
    %122 = vmatprep.subr.mxu0 0.0
    %123 = vmatpush1.msra.mxu0 0.0
    %124 = vmatprep.subr.mxu0 0.0
    %125 = vmatpush1.msra.mxu0 0.0
    %126 = vmatprep.subr.mxu0 0.0
    %127 = vmatpush1.msra.mxu0 0.0
    %128 = vmatprep.subr.mxu0 0.0
    %129 = vmatpush1.msra.mxu0 0.0
    %130 = vmatprep.subr.mxu0 0.0
    %131 = vmatpush1.msra.mxu0 0.0
    %132 = vmatprep.subr.mxu0 0.0
    %133 = vmatpush1.msra.mxu0 0.0
    %134 = vmatprep.subr.mxu0 0.0
    %135 = vmatpush1.msra.mxu0 0.0
    %136 = vmatprep.subr.mxu0 0.0
    %137 = vmatpush1.msra.mxu0 0.0
    %138 = vmatprep.subr.mxu0 0.0
    %139 = vmatpush1.msra.mxu0 0.0
    %140 = vmatprep.subr.mxu0 0.0
    %141 = vmatpush1.msra.mxu0 0.0
    %142 = vmatprep.subr.mxu0 0.0
    %143 = vmatpush1.msra.mxu0 0.0
    %144 = vmatprep.subr.mxu0 0.0
    %145 = vmatpush1.msra.mxu0 %v108
    %146 = vmatprep.subr.mxu0 0.0
    %147 = vmatpush2.msra.mxu0 0.0
    %148 = vmatprep.subr.mxu0 0.0
    %149 = vmatpush2.msra.mxu0 0.0
    %150 = vmatprep.subr.mxu0 0.0
    %151 = vmatpush2.msra.mxu0 0.0
    %152 = vmatprep.subr.mxu0 0.0
    %153 = vmatpush2.msra.mxu0 0.0
    %154 = vmatprep.subr.mxu0 0.0
    %155 = vmatpush2.msra.mxu0 0.0
    %156 = vmatprep.subr.mxu0 0.0
    %157 = vmatpush2.msra.mxu0 0.0
    %158 = vmatprep.subr.mxu0 0.0
    %159 = vmatpush2.msra.mxu0 0.0
    %160 = vmatprep.subr.mxu0 0.0
    %161 = vmatpush2.msra.mxu0 0.0
    %162 = vmatprep.subr.mxu0 0.0
    %163 = vmatpush2.msra.mxu0 0.0
    %164 = vmatprep.subr.mxu0 0.0
    %165 = vmatpush2.msra.mxu0 0.0
    %166 = vmatprep.subr.mxu0 0.0
    %167 = vmatpush2.msra.mxu0 0.0
    %168 = vmatprep.subr.mxu0 0.0
    %169 = vmatpush2.msra.mxu0 0.0
    %170 = vmatprep.subr.mxu0 0.0
    %171 = vmatpush2.msra.mxu0 0.0
    %172 = vmatprep.subr.mxu0 0.0
    %173 = vmatpush2.msra.mxu0 0.0
    %174 = vmatprep.subr.mxu0 0.0
    %175 = vmatpush2.msra.mxu0 0.0
    %176 = vmatprep.subr.mxu0 0.0
    %177 = vmatpush2.msra.mxu0 0.0
    %178 = vmatprep.mubr.f32.mxu0 0.0
    %179 = vmatmul.mubr.f32.gmra.mxu0 %v112
    %v180 = vpop.f32.mrf.mxu0
    %v181 = vadd.f32 %v110, %v180
    %v182 = vpop.f32.mrf.mxu0
    %183 = vdwg.mxu0
    %s184 = scalar_lea.vmem %s2, 16
    %v185 = vld [vmem:[%s184] sm:$0x1]
    %s186 = scalar_lea.vmem [#allocation2], 144
    %v187 = vld [vmem:[%s186] sm:$0xff]
    %s188 = scalar_lea.vmem %s1, 16
    %v189 = vld [vmem:[%s188 + $0x1] sm:$0x1]
    %v191 = vsel %vm31, %v185, 0
    %193 = vmatprep.subr.mxu0 0.0
    %194 = vmatpush1.msra.mxu0 0.0
    %195 = vmatprep.subr.mxu0 0.0
    %196 = vmatpush1.msra.mxu0 0.0
    %197 = vmatprep.subr.mxu0 0.0
    %198 = vmatpush1.msra.mxu0 0.0
    %199 = vmatprep.subr.mxu0 0.0
    %200 = vmatpush1.msra.mxu0 0.0
    %201 = vmatprep.subr.mxu0 0.0
    %202 = vmatpush1.msra.mxu0 0.0
    %203 = vmatprep.subr.mxu0 0.0
    %204 = vmatpush1.msra.mxu0 0.0
    %205 = vmatprep.subr.mxu0 0.0
    %206 = vmatpush1.msra.mxu0 0.0
    %207 = vmatprep.subr.mxu0 0.0
    %208 = vmatpush1.msra.mxu0 0.0
    %209 = vmatprep.subr.mxu0 0.0
    %210 = vmatpush1.msra.mxu0 0.0
    %211 = vmatprep.subr.mxu0 0.0
    %212 = vmatpush1.msra.mxu0 0.0
    %213 = vmatprep.subr.mxu0 0.0
    %214 = vmatpush1.msra.mxu0 0.0
    %215 = vmatprep.subr.mxu0 0.0
    %216 = vmatpush1.msra.mxu0 0.0
    %217 = vmatprep.subr.mxu0 0.0
    %218 = vmatpush1.msra.mxu0 0.0
    %219 = vmatprep.subr.mxu0 0.0
    %220 = vmatpush1.msra.mxu0 0.0
    %221 = vmatprep.subr.mxu0 0.0
    %222 = vmatpush1.msra.mxu0 0.0
    %223 = vmatprep.subr.mxu0 0.0
    %224 = vmatpush1.msra.mxu0 %v187
    %225 = vmatprep.subr.mxu0 0.0
    %226 = vmatpush2.msra.mxu0 0.0
    %227 = vmatprep.subr.mxu0 0.0
    %228 = vmatpush2.msra.mxu0 0.0
    %229 = vmatprep.subr.mxu0 0.0
    %230 = vmatpush2.msra.mxu0 0.0
    %231 = vmatprep.subr.mxu0 0.0
    %232 = vmatpush2.msra.mxu0 0.0
    %233 = vmatprep.subr.mxu0 0.0
    %234 = vmatpush2.msra.mxu0 0.0
    %235 = vmatprep.subr.mxu0 0.0
    %236 = vmatpush2.msra.mxu0 0.0
    %237 = vmatprep.subr.mxu0 0.0
    %238 = vmatpush2.msra.mxu0 0.0
    %239 = vmatprep.subr.mxu0 0.0
    %240 = vmatpush2.msra.mxu0 0.0
    %241 = vmatprep.subr.mxu0 0.0
    %242 = vmatpush2.msra.mxu0 0.0
    %243 = vmatprep.subr.mxu0 0.0
    %244 = vmatpush2.msra.mxu0 0.0
    %245 = vmatprep.subr.mxu0 0.0
    %246 = vmatpush2.msra.mxu0 0.0
    %247 = vmatprep.subr.mxu0 0.0
    %248 = vmatpush2.msra.mxu0 0.0
    %249 = vmatprep.subr.mxu0 0.0
    %250 = vmatpush2.msra.mxu0 0.0
    %251 = vmatprep.subr.mxu0 0.0
    %252 = vmatpush2.msra.mxu0 0.0
    %253 = vmatprep.subr.mxu0 0.0
    %254 = vmatpush2.msra.mxu0 0.0
    %255 = vmatprep.subr.mxu0 0.0
    %256 = vmatpush2.msra.mxu0 0.0
    %257 = vmatprep.mubr.f32.mxu0 0.0
    %258 = vmatmul.mubr.f32.gmra.mxu0 %v191
    %v259 = vpop.f32.mrf.mxu0
    %v260 = vadd.f32 %v189, %v259
    %v261 = vpop.f32.mrf.mxu0
    %262 = vdwg.mxu0
    %v263 = vld [vmem:[%s1] sm:$0x1]
    %v264 = vld [vmem:[%s1 + $0x2] sm:$0x1]
    %v265 = vld [vmem:[%s1 + $0x3] sm:$0x1]
    %v266 = vld [vmem:[#allocation2 + $0x8] sm:$0xff]
    %v267 = vld [vmem:[#allocation2 + $0x10] sm:$0xff]
    %v268 = vld [vmem:[#allocation2 + $0x18] sm:$0xff]
    %v269 = vld [vmem:[#allocation2 + $0x20] sm:$0xff]
    %v270 = vld [vmem:[#allocation2 + $0x28] sm:$0xff]
    %v271 = vld [vmem:[#allocation2 + $0x30] sm:$0xff]
    %v272 = vld [vmem:[#allocation2 + $0x38] sm:$0xff]
    %v273 = vld [vmem:[#allocation2 + $0x40] sm:$0xff]
    %v274 = vmul.f32 %v263, 0.0
    %v275 = vadd.f32 %v102, %v274
    %v276 = vmax.f32 %v275, 0.0
    %vm277 = vcmask 261120
    %v279 = vsel %vm277, %v276, 0
    %281 = vmatprep.subr.mxu0 0.0
    %282 = vmatpush1.msra.mxu0 0.0
    %283 = vmatprep.subr.mxu0 0.0
    %284 = vmatpush1.msra.mxu0 0.0
    %285 = vmatprep.subr.mxu0 0.0
    %286 = vmatpush1.msra.mxu0 0.0
    %287 = vmatprep.subr.mxu0 0.0
    %288 = vmatpush1.msra.mxu0 0.0
    %289 = vmatprep.subr.mxu0 0.0
    %290 = vmatpush1.msra.mxu0 0.0
    %291 = vmatprep.subr.mxu0 0.0
    %292 = vmatpush1.msra.mxu0 0.0
    %293 = vmatprep.subr.mxu0 0.0
    %294 = vmatpush1.msra.mxu0 0.0
    %295 = vmatprep.subr.mxu0 0.0
    %296 = vmatpush1.msra.mxu0 0.0
    %297 = vmatprep.subr.mxu0 0.0
    %298 = vmatpush1.msra.mxu0 0.0
    %299 = vmatprep.subr.mxu0 0.0
    %300 = vmatpush1.msra.mxu0 0.0
    %301 = vmatprep.subr.mxu0 0.0
    %302 = vmatpush1.msra.mxu0 0.0
    %303 = vmatprep.subr.mxu0 0.0
    %304 = vmatpush1.msra.mxu0 0.0
    %305 = vmatprep.subr.mxu0 0.0
    %306 = vmatpush1.msra.mxu0 %v269
    %307 = vmatprep.subr.mxu0 0.0
    %308 = vmatpush1.msra.mxu0 %v268
    %309 = vmatprep.subr.mxu0 0.0
    %310 = vmatpush1.msra.mxu0 %v267
    %311 = vmatprep.subr.mxu0 0.0
    %312 = vmatpush1.msra.mxu0 %v266
    %313 = vmatprep.subr.mxu0 0.0
    %314 = vmatpush2.msra.mxu0 0.0
    %315 = vmatprep.subr.mxu0 0.0
    %316 = vmatpush2.msra.mxu0 0.0
    %317 = vmatprep.subr.mxu0 0.0
    %318 = vmatpush2.msra.mxu0 0.0
    %319 = vmatprep.subr.mxu0 0.0
    %320 = vmatpush2.msra.mxu0 0.0
    %321 = vmatprep.subr.mxu0 0.0
    %322 = vmatpush2.msra.mxu0 0.0
    %323 = vmatprep.subr.mxu0 0.0
    %324 = vmatpush2.msra.mxu0 0.0
    %325 = vmatprep.subr.mxu0 0.0
    %326 = vmatpush2.msra.mxu0 0.0
    %327 = vmatprep.subr.mxu0 0.0
    %328 = vmatpush2.msra.mxu0 0.0
    %329 = vmatprep.subr.mxu0 0.0
    %330 = vmatpush2.msra.mxu0 0.0
    %331 = vmatprep.subr.mxu0 0.0
    %332 = vmatpush2.msra.mxu0 0.0
    %333 = vmatprep.subr.mxu0 0.0
    %334 = vmatpush2.msra.mxu0 0.0
    %335 = vmatprep.subr.mxu0 0.0
    %336 = vmatpush2.msra.mxu0 0.0
    %337 = vmatprep.subr.mxu0 0.0
    %338 = vmatpush2.msra.mxu0 0.0
    %339 = vmatprep.subr.mxu0 0.0
    %340 = vmatpush2.msra.mxu0 0.0
    %341 = vmatprep.subr.mxu0 0.0
    %342 = vmatpush2.msra.mxu0 0.0
    %343 = vmatprep.subr.mxu0 0.0
    %344 = vmatpush2.msra.mxu0 0.0
    %345 = vmatprep.mubr.f32.mxu0 0.0
    %346 = vmatmul.mubr.f32.gmra.mxu0 %v279
    %v347 = vpop.f32.mrf.mxu0
    %v348 = vadd.f32 %v264, %v347
    %v349 = vpop.f32.mrf.mxu0
    %350 = vdwg.mxu0
    %v351 = vmax.f32 %v348, 0.0
    %v353 = vsel %vm277, %v351, 0
    %355 = vmatprep.subr.mxu0 0.0
    %356 = vmatpush1.msra.mxu0 0.0
    %357 = vmatprep.subr.mxu0 0.0
    %358 = vmatpush1.msra.mxu0 0.0
    %359 = vmatprep.subr.mxu0 0.0
    %360 = vmatpush1.msra.mxu0 0.0
    %361 = vmatprep.subr.mxu0 0.0
    %362 = vmatpush1.msra.mxu0 0.0
    %363 = vmatprep.subr.mxu0 0.0
    %364 = vmatpush1.msra.mxu0 0.0
    %365 = vmatprep.subr.mxu0 0.0
    %366 = vmatpush1.msra.mxu0 0.0
    %367 = vmatprep.subr.mxu0 0.0
    %368 = vmatpush1.msra.mxu0 0.0
    %369 = vmatprep.subr.mxu0 0.0
    %370 = vmatpush1.msra.mxu0 0.0
    %371 = vmatprep.subr.mxu0 0.0
    %372 = vmatpush1.msra.mxu0 0.0
    %373 = vmatprep.subr.mxu0 0.0
    %374 = vmatpush1.msra.mxu0 0.0
    %375 = vmatprep.subr.mxu0 0.0
    %376 = vmatpush1.msra.mxu0 0.0
    %377 = vmatprep.subr.mxu0 0.0
    %378 = vmatpush1.msra.mxu0 0.0
    %379 = vmatprep.subr.mxu0 0.0
    %380 = vmatpush1.msra.mxu0 %v273
    %381 = vmatprep.subr.mxu0 0.0
    %382 = vmatpush1.msra.mxu0 %v272
    %383 = vmatprep.subr.mxu0 0.0
    %384 = vmatpush1.msra.mxu0 %v271
    %385 = vmatprep.subr.mxu0 0.0
    %386 = vmatpush1.msra.mxu0 %v270
    %387 = vmatprep.subr.mxu0 0.0
    %388 = vmatpush2.msra.mxu0 0.0
    %389 = vmatprep.subr.mxu0 0.0
    %390 = vmatpush2.msra.mxu0 0.0
    %391 = vmatprep.subr.mxu0 0.0
    %392 = vmatpush2.msra.mxu0 0.0
    %393 = vmatprep.subr.mxu0 0.0
    %394 = vmatpush2.msra.mxu0 0.0
    %395 = vmatprep.subr.mxu0 0.0
    %396 = vmatpush2.msra.mxu0 0.0
    %397 = vmatprep.subr.mxu0 0.0
    %398 = vmatpush2.msra.mxu0 0.0
    %399 = vmatprep.subr.mxu0 0.0
    %400 = vmatpush2.msra.mxu0 0.0
    %401 = vmatprep.subr.mxu0 0.0
    %402 = vmatpush2.msra.mxu0 0.0
    %403 = vmatprep.subr.mxu0 0.0
    %404 = vmatpush2.msra.mxu0 0.0
    %405 = vmatprep.subr.mxu0 0.0
    %406 = vmatpush2.msra.mxu0 0.0
    %407 = vmatprep.subr.mxu0 0.0
    %408 = vmatpush2.msra.mxu0 0.0
    %409 = vmatprep.subr.mxu0 0.0
    %410 = vmatpush2.msra.mxu0 0.0
    %411 = vmatprep.subr.mxu0 0.0
    %412 = vmatpush2.msra.mxu0 0.0
    %413 = vmatprep.subr.mxu0 0.0
    %414 = vmatpush2.msra.mxu0 0.0
    %415 = vmatprep.subr.mxu0 0.0
    %416 = vmatpush2.msra.mxu0 0.0
    %417 = vmatprep.subr.mxu0 0.0
    %418 = vmatpush2.msra.mxu0 0.0
    %419 = vmatprep.mubr.f32.mxu0 0.0
    %420 = vmatmul.mubr.f32.gmra.mxu0 %v353
    %v421 = vpop.f32.mrf.mxu0
    %v422 = vadd.f32 %v265, %v421
    %v423 = vpop.f32.mrf.mxu0
    %424 = vdwg.mxu0
    %v425 = vld [vmem:[%s109] sm:$0x1]
    %v426 = vld [vmem:[%s109 + $0x2] sm:$0x1]
    %v427 = vld [vmem:[%s109 + $0x3] sm:$0x1]
    %v428 = vld [vmem:[%s107 + $0x8] sm:$0xff]
    %v429 = vld [vmem:[%s107 + $0x10] sm:$0xff]
    %v430 = vld [vmem:[%s107 + $0x18] sm:$0xff]
    %v431 = vld [vmem:[%s107 + $0x20] sm:$0xff]
    %v432 = vld [vmem:[%s107 + $0x28] sm:$0xff]
    %v433 = vld [vmem:[%s107 + $0x30] sm:$0xff]
    %v434 = vld [vmem:[%s107 + $0x38] sm:$0xff]
    %v435 = vld [vmem:[%s107 + $0x40] sm:$0xff]
    %437 = vset.pattern.permute.xlu0 0
    %438 = vperm.xlu0 %437, %v422
    %v439 = vpop.permute.xlu0 %438
    %v441 = vmul.f32 %v439, %v425
    %v442 = vadd.f32 %v181, %v441
    %v443 = vmax.f32 %v442, 0.0
    %v445 = vsel %vm277, %v443, 0
    %447 = vmatprep.subr.mxu0 0.0
    %448 = vmatpush1.msra.mxu0 0.0
    %449 = vmatprep.subr.mxu0 0.0
    %450 = vmatpush1.msra.mxu0 0.0
    %451 = vmatprep.subr.mxu0 0.0
    %452 = vmatpush1.msra.mxu0 0.0
    %453 = vmatprep.subr.mxu0 0.0
    %454 = vmatpush1.msra.mxu0 0.0
    %455 = vmatprep.subr.mxu0 0.0
    %456 = vmatpush1.msra.mxu0 0.0
    %457 = vmatprep.subr.mxu0 0.0
    %458 = vmatpush1.msra.mxu0 0.0
    %459 = vmatprep.subr.mxu0 0.0
    %460 = vmatpush1.msra.mxu0 0.0
    %461 = vmatprep.subr.mxu0 0.0
    %462 = vmatpush1.msra.mxu0 0.0
    %463 = vmatprep.subr.mxu0 0.0
    %464 = vmatpush1.msra.mxu0 0.0
    %465 = vmatprep.subr.mxu0 0.0
    %466 = vmatpush1.msra.mxu0 0.0
    %467 = vmatprep.subr.mxu0 0.0
    %468 = vmatpush1.msra.mxu0 0.0
    %469 = vmatprep.subr.mxu0 0.0
    %470 = vmatpush1.msra.mxu0 0.0
    %471 = vmatprep.subr.mxu0 0.0
    %472 = vmatpush1.msra.mxu0 %v431
    %473 = vmatprep.subr.mxu0 0.0
    %474 = vmatpush1.msra.mxu0 %v430
    %475 = vmatprep.subr.mxu0 0.0
    %476 = vmatpush1.msra.mxu0 %v429
    %477 = vmatprep.subr.mxu0 0.0
    %478 = vmatpush1.msra.mxu0 %v428
    %479 = vmatprep.subr.mxu0 0.0
    %480 = vmatpush2.msra.mxu0 0.0
    %481 = vmatprep.subr.mxu0 0.0
    %482 = vmatpush2.msra.mxu0 0.0
    %483 = vmatprep.subr.mxu0 0.0
    %484 = vmatpush2.msra.mxu0 0.0
    %485 = vmatprep.subr.mxu0 0.0
    %486 = vmatpush2.msra.mxu0 0.0
    %487 = vmatprep.subr.mxu0 0.0
    %488 = vmatpush2.msra.mxu0 0.0
    %489 = vmatprep.subr.mxu0 0.0
    %490 = vmatpush2.msra.mxu0 0.0
    %491 = vmatprep.subr.mxu0 0.0
    %492 = vmatpush2.msra.mxu0 0.0
    %493 = vmatprep.subr.mxu0 0.0
    %494 = vmatpush2.msra.mxu0 0.0
    %495 = vmatprep.subr.mxu0 0.0
    %496 = vmatpush2.msra.mxu0 0.0
    %497 = vmatprep.subr.mxu0 0.0
    %498 = vmatpush2.msra.mxu0 0.0
    %499 = vmatprep.subr.mxu0 0.0
    %500 = vmatpush2.msra.mxu0 0.0
    %501 = vmatprep.subr.mxu0 0.0
    %502 = vmatpush2.msra.mxu0 0.0
    %503 = vmatprep.subr.mxu0 0.0
    %504 = vmatpush2.msra.mxu0 0.0
    %505 = vmatprep.subr.mxu0 0.0
    %506 = vmatpush2.msra.mxu0 0.0
    %507 = vmatprep.subr.mxu0 0.0
    %508 = vmatpush2.msra.mxu0 0.0
    %509 = vmatprep.subr.mxu0 0.0
    %510 = vmatpush2.msra.mxu0 0.0
    %511 = vmatprep.mubr.f32.mxu0 0.0
    %512 = vmatmul.mubr.f32.gmra.mxu0 %v445
    %v513 = vpop.f32.mrf.mxu0
    %v514 = vadd.f32 %v426, %v513
    %v515 = vpop.f32.mrf.mxu0
    %516 = vdwg.mxu0
    %v517 = vmax.f32 %v514, 0.0
    %v519 = vsel %vm277, %v517, 0
    %521 = vmatprep.subr.mxu0 0.0
    %522 = vmatpush1.msra.mxu0 0.0
    %523 = vmatprep.subr.mxu0 0.0
    %524 = vmatpush1.msra.mxu0 0.0
    %525 = vmatprep.subr.mxu0 0.0
    %526 = vmatpush1.msra.mxu0 0.0
    %527 = vmatprep.subr.mxu0 0.0
    %528 = vmatpush1.msra.mxu0 0.0
    %529 = vmatprep.subr.mxu0 0.0
    %530 = vmatpush1.msra.mxu0 0.0
    %531 = vmatprep.subr.mxu0 0.0
    %532 = vmatpush1.msra.mxu0 0.0
    %533 = vmatprep.subr.mxu0 0.0
    %534 = vmatpush1.msra.mxu0 0.0
    %535 = vmatprep.subr.mxu0 0.0
    %536 = vmatpush1.msra.mxu0 0.0
    %537 = vmatprep.subr.mxu0 0.0
    %538 = vmatpush1.msra.mxu0 0.0
    %539 = vmatprep.subr.mxu0 0.0
    %540 = vmatpush1.msra.mxu0 0.0
    %541 = vmatprep.subr.mxu0 0.0
    %542 = vmatpush1.msra.mxu0 0.0
    %543 = vmatprep.subr.mxu0 0.0
    %544 = vmatpush1.msra.mxu0 0.0
    %545 = vmatprep.subr.mxu0 0.0
    %546 = vmatpush1.msra.mxu0 %v435
    %547 = vmatprep.subr.mxu0 0.0
    %548 = vmatpush1.msra.mxu0 %v434
    %549 = vmatprep.subr.mxu0 0.0
    %550 = vmatpush1.msra.mxu0 %v433
    %551 = vmatprep.subr.mxu0 0.0
    %552 = vmatpush1.msra.mxu0 %v432
    %553 = vmatprep.subr.mxu0 0.0
    %554 = vmatpush2.msra.mxu0 0.0
    %555 = vmatprep.subr.mxu0 0.0
    %556 = vmatpush2.msra.mxu0 0.0
    %557 = vmatprep.subr.mxu0 0.0
    %558 = vmatpush2.msra.mxu0 0.0
    %559 = vmatprep.subr.mxu0 0.0
    %560 = vmatpush2.msra.mxu0 0.0
    %561 = vmatprep.subr.mxu0 0.0
    %562 = vmatpush2.msra.mxu0 0.0
    %563 = vmatprep.subr.mxu0 0.0
    %564 = vmatpush2.msra.mxu0 0.0
    %565 = vmatprep.subr.mxu0 0.0
    %566 = vmatpush2.msra.mxu0 0.0
    %567 = vmatprep.subr.mxu0 0.0
    %568 = vmatpush2.msra.mxu0 0.0
    %569 = vmatprep.subr.mxu0 0.0
    %570 = vmatpush2.msra.mxu0 0.0
    %571 = vmatprep.subr.mxu0 0.0
    %572 = vmatpush2.msra.mxu0 0.0
    %573 = vmatprep.subr.mxu0 0.0
    %574 = vmatpush2.msra.mxu0 0.0
    %575 = vmatprep.subr.mxu0 0.0
    %576 = vmatpush2.msra.mxu0 0.0
    %577 = vmatprep.subr.mxu0 0.0
    %578 = vmatpush2.msra.mxu0 0.0
    %579 = vmatprep.subr.mxu0 0.0
    %580 = vmatpush2.msra.mxu0 0.0
    %581 = vmatprep.subr.mxu0 0.0
    %582 = vmatpush2.msra.mxu0 0.0
    %583 = vmatprep.subr.mxu0 0.0
    %584 = vmatpush2.msra.mxu0 0.0
    %585 = vmatprep.mubr.f32.mxu0 0.0
    %586 = vmatmul.mubr.f32.gmra.mxu0 %v519
    %v587 = vpop.f32.mrf.mxu0
    %v588 = vadd.f32 %v427, %v587
    %v589 = vpop.f32.mrf.mxu0
    %590 = vdwg.mxu0
    %v591 = vld [vmem:[%s188] sm:$0x1]
    %v592 = vld [vmem:[%s188 + $0x2] sm:$0x1]
    %v593 = vld [vmem:[%s188 + $0x3] sm:$0x1]
    %v594 = vld [vmem:[%s186 + $0x8] sm:$0xff]
    %v595 = vld [vmem:[%s186 + $0x10] sm:$0xff]
    %v596 = vld [vmem:[%s186 + $0x18] sm:$0xff]
    %v597 = vld [vmem:[%s186 + $0x20] sm:$0xff]
    %v598 = vld [vmem:[%s186 + $0x28] sm:$0xff]
    %v599 = vld [vmem:[%s186 + $0x30] sm:$0xff]
    %v600 = vld [vmem:[%s186 + $0x38] sm:$0xff]
    %v601 = vld [vmem:[%s186 + $0x40] sm:$0xff]
    %603 = vset.pattern.permute.xlu0 0
    %604 = vperm.xlu0 %603, %v588
    %v605 = vpop.permute.xlu0 %604
    %v607 = vmul.f32 %v605, %v591
    %v608 = vadd.f32 %v260, %v607
    %v609 = vmax.f32 %v608, 0.0
    %v611 = vsel %vm277, %v609, 0
    %613 = vmatprep.subr.mxu0 0.0
    %614 = vmatpush1.msra.mxu0 0.0
    %615 = vmatprep.subr.mxu0 0.0
    %616 = vmatpush1.msra.mxu0 0.0
    %617 = vmatprep.subr.mxu0 0.0
    %618 = vmatpush1.msra.mxu0 0.0
    %619 = vmatprep.subr.mxu0 0.0
    %620 = vmatpush1.msra.mxu0 0.0
    %621 = vmatprep.subr.mxu0 0.0
    %622 = vmatpush1.msra.mxu0 0.0
    %623 = vmatprep.subr.mxu0 0.0
    %624 = vmatpush1.msra.mxu0 0.0
    %625 = vmatprep.subr.mxu0 0.0
    %626 = vmatpush1.msra.mxu0 0.0
    %627 = vmatprep.subr.mxu0 0.0
    %628 = vmatpush1.msra.mxu0 0.0
    %629 = vmatprep.subr.mxu0 0.0
    %630 = vmatpush1.msra.mxu0 0.0
    %631 = vmatprep.subr.mxu0 0.0
    %632 = vmatpush1.msra.mxu0 0.0
    %633 = vmatprep.subr.mxu0 0.0
    %634 = vmatpush1.msra.mxu0 0.0
    %635 = vmatprep.subr.mxu0 0.0
    %636 = vmatpush1.msra.mxu0 0.0
    %637 = vmatprep.subr.mxu0 0.0
    %638 = vmatpush1.msra.mxu0 %v597
    %639 = vmatprep.subr.mxu0 0.0
    %640 = vmatpush1.msra.mxu0 %v596
    %641 = vmatprep.subr.mxu0 0.0
    %642 = vmatpush1.msra.mxu0 %v595
    %643 = vmatprep.subr.mxu0 0.0
    %644 = vmatpush1.msra.mxu0 %v594
    %645 = vmatprep.subr.mxu0 0.0
    %646 = vmatpush2.msra.mxu0 0.0
    %647 = vmatprep.subr.mxu0 0.0
    %648 = vmatpush2.msra.mxu0 0.0
    %649 = vmatprep.subr.mxu0 0.0
    %650 = vmatpush2.msra.mxu0 0.0
    %651 = vmatprep.subr.mxu0 0.0
    %652 = vmatpush2.msra.mxu0 0.0
    %653 = vmatprep.subr.mxu0 0.0
    %654 = vmatpush2.msra.mxu0 0.0
    %655 = vmatprep.subr.mxu0 0.0
    %656 = vmatpush2.msra.mxu0 0.0
    %657 = vmatprep.subr.mxu0 0.0
    %658 = vmatpush2.msra.mxu0 0.0
    %659 = vmatprep.subr.mxu0 0.0
    %660 = vmatpush2.msra.mxu0 0.0
    %661 = vmatprep.subr.mxu0 0.0
    %662 = vmatpush2.msra.mxu0 0.0
    %663 = vmatprep.subr.mxu0 0.0
    %664 = vmatpush2.msra.mxu0 0.0
    %665 = vmatprep.subr.mxu0 0.0
    %666 = vmatpush2.msra.mxu0 0.0
    %667 = vmatprep.subr.mxu0 0.0
    %668 = vmatpush2.msra.mxu0 0.0
    %669 = vmatprep.subr.mxu0 0.0
    %670 = vmatpush2.msra.mxu0 0.0
    %671 = vmatprep.subr.mxu0 0.0
    %672 = vmatpush2.msra.mxu0 0.0
    %673 = vmatprep.subr.mxu0 0.0
    %674 = vmatpush2.msra.mxu0 0.0
    %675 = vmatprep.subr.mxu0 0.0
    %676 = vmatpush2.msra.mxu0 0.0
    %677 = vmatprep.mubr.f32.mxu0 0.0
    %678 = vmatmul.mubr.f32.gmra.mxu0 %v611
    %v679 = vpop.f32.mrf.mxu0
    %v680 = vadd.f32 %v592, %v679
    %v681 = vpop.f32.mrf.mxu0
    %682 = vdwg.mxu0
    %v683 = vmax.f32 %v680, 0.0
    %v685 = vsel %vm277, %v683, 0
    %687 = vmatprep.subr.mxu0 0.0
    %688 = vmatpush1.msra.mxu0 0.0
    %689 = vmatprep.subr.mxu0 0.0
    %690 = vmatpush1.msra.mxu0 0.0
    %691 = vmatprep.subr.mxu0 0.0
    %692 = vmatpush1.msra.mxu0 0.0
    %693 = vmatprep.subr.mxu0 0.0
    %694 = vmatpush1.msra.mxu0 0.0
    %695 = vmatprep.subr.mxu0 0.0
    %696 = vmatpush1.msra.mxu0 0.0
    %697 = vmatprep.subr.mxu0 0.0
    %698 = vmatpush1.msra.mxu0 0.0
    %699 = vmatprep.subr.mxu0 0.0
    %700 = vmatpush1.msra.mxu0 0.0
    %701 = vmatprep.subr.mxu0 0.0
    %702 = vmatpush1.msra.mxu0 0.0
    %703 = vmatprep.subr.mxu0 0.0
    %704 = vmatpush1.msra.mxu0 0.0
    %705 = vmatprep.subr.mxu0 0.0
    %706 = vmatpush1.msra.mxu0 0.0
    %707 = vmatprep.subr.mxu0 0.0
    %708 = vmatpush1.msra.mxu0 0.0
    %709 = vmatprep.subr.mxu0 0.0
    %710 = vmatpush1.msra.mxu0 0.0
    %711 = vmatprep.subr.mxu0 0.0
    %712 = vmatpush1.msra.mxu0 %v601
    %713 = vmatprep.subr.mxu0 0.0
    %714 = vmatpush1.msra.mxu0 %v600
    %715 = vmatprep.subr.mxu0 0.0
    %716 = vmatpush1.msra.mxu0 %v599
    %717 = vmatprep.subr.mxu0 0.0
    %718 = vmatpush1.msra.mxu0 %v598
    %719 = vmatprep.subr.mxu0 0.0
    %720 = vmatpush2.msra.mxu0 0.0
    %721 = vmatprep.subr.mxu0 0.0
    %722 = vmatpush2.msra.mxu0 0.0
    %723 = vmatprep.subr.mxu0 0.0
    %724 = vmatpush2.msra.mxu0 0.0
    %725 = vmatprep.subr.mxu0 0.0
    %726 = vmatpush2.msra.mxu0 0.0
    %727 = vmatprep.subr.mxu0 0.0
    %728 = vmatpush2.msra.mxu0 0.0
    %729 = vmatprep.subr.mxu0 0.0
    %730 = vmatpush2.msra.mxu0 0.0
    %731 = vmatprep.subr.mxu0 0.0
    %732 = vmatpush2.msra.mxu0 0.0
    %733 = vmatprep.subr.mxu0 0.0
    %734 = vmatpush2.msra.mxu0 0.0
    %735 = vmatprep.subr.mxu0 0.0
    %736 = vmatpush2.msra.mxu0 0.0
    %737 = vmatprep.subr.mxu0 0.0
    %738 = vmatpush2.msra.mxu0 0.0
    %739 = vmatprep.subr.mxu0 0.0
    %740 = vmatpush2.msra.mxu0 0.0
    %741 = vmatprep.subr.mxu0 0.0
    %742 = vmatpush2.msra.mxu0 0.0
    %743 = vmatprep.subr.mxu0 0.0
    %744 = vmatpush2.msra.mxu0 0.0
    %745 = vmatprep.subr.mxu0 0.0
    %746 = vmatpush2.msra.mxu0 0.0
    %747 = vmatprep.subr.mxu0 0.0
    %748 = vmatpush2.msra.mxu0 0.0
    %749 = vmatprep.subr.mxu0 0.0
    %750 = vmatpush2.msra.mxu0 0.0
    %751 = vmatprep.mubr.f32.mxu0 0.0
    %752 = vmatmul.mubr.f32.gmra.mxu0 %v685
    %v753 = vpop.f32.mrf.mxu0
    %v754 = vadd.f32 %v593, %v753
    %v755 = vpop.f32.mrf.mxu0
    %756 = vdwg.mxu0
    %757 = vst [vmem:[%s3] sm:$0xff] 0.0
    %vm758 = vcmask 24576
    %759 = vst.msk [vmem:[%s3] sm:$0x1] %vm758, %v754
    // Predicated region
    $region18: #{run.1} parent=1 // pred_check
      _
    $region19: #{run.1} parent=1 // pred_check_branch
      %761 = sbr.rel (0) target = $region21
    $region20: #{run.1} parent=1 // pred_region
      _
    $region21: #{run.1} parent=1 // pred_fallthru
      _
    // Predicated region
    $region22: #{run.1} parent=1 // pred_check
      _
    $region23: #{run.1} parent=1 // pred_check_branch
      %763 = sbr.rel (0) target = $region25
    $region24: #{run.1} parent=1 // pred_region
      _
    $region25: #{run.1} parent=1 // pred_fallthru
      _
    %764 = vsyncpa [#allocation3], 1

</llo_original>
